<compile_context>
chip_gen: v6e
topology: v6e:2x2x1
jax: 0.10.0
libtpu: 0.0.40
codegen_flags: <defaults>
</compile_context>

<pallas_src>
import functools

import jax
import jax.numpy as jnp
from jax.experimental import pallas as pl
from jax.experimental.pallas import tpu as pltpu


def _pos_embed_kernel(ids_ref, pos_ref, emb_hbm, out_ref, gbuf, sems, *,
                      seq_len, nslots):
    # ids_ref : (B, S) int32 in SMEM (scalar prefetch)
    # pos_ref : (S, H) VMEM block (grid-invariant)
    # emb_hbm : (V, H) raw HBM ref (no auto-DMA)
    # out_ref : (1, S, H) VMEM output block for batch row b
    # gbuf    : (S, H) VMEM scratch (gather destination)
    # sems    : (nslots,) DMA semaphores (bounds in-flight copies)
    b = pl.program_id(0)

    def start_row(t):
        tok = ids_ref[b, t]                       # token id -> table row
        pltpu.make_async_copy(
            emb_hbm.at[pl.ds(tok, 1), :],
            gbuf.at[pl.ds(t, 1), :],
            sems.at[t % nslots],
        ).start()

    def wait_row(t):
        pltpu.make_async_copy(
            emb_hbm.at[pl.ds(0, 1), :],           # shape-only; wait keys on sem
            gbuf.at[pl.ds(t, 1), :],
            sems.at[t % nslots],
        ).wait()

    # Prime up to `nslots` outstanding row gathers.
    @pl.loop(0, nslots)
    def _(t):
        start_row(t)

    # Chase the waits while keeping the DMA queue full.
    @pl.loop(0, seq_len)
    def _(t):
        wait_row(t)

        @pl.when(t + nslots < seq_len)
        def _():
            start_row(t + nslots)

    # Positional add on the VPU; single dense store of the whole sequence block.
    out_ref[0] = gbuf[...] + pos_ref[...]


def positional_embedding(input_ids, emb_table, pos_enc, *, max_inflight=8):
    """input_ids: (B, S) int32; emb_table: (V, H); pos_enc: (max_pos, H)."""
    B, S = input_ids.shape
    V, H = emb_table.shape
    max_pos, Hp = pos_enc.shape
    assert Hp == H
    assert S <= max_pos, "sequence longer than max_position_embeddings"

    # Slice the encodings to the actual sequence length (identical to the
    # PyTorch broadcast when S == max_position_embeddings) and match dtypes.
    pos = pos_enc[:S].astype(emb_table.dtype)
    ids = input_ids.astype(jnp.int32)

    nslots = max(1, min(max_inflight, S))
    kernel = functools.partial(_pos_embed_kernel, seq_len=S, nslots=nslots)

    return pl.pallas_call(
        kernel,
        out_shape=jax.ShapeDtypeStruct((B, S, H), emb_table.dtype),
        grid_spec=pltpu.PrefetchScalarGridSpec(
            num_scalar_prefetch=1,                 # input_ids -> SMEM
            grid=(B,),
            in_specs=[
                # position encodings: grid-invariant VMEM block
                pl.BlockSpec((S, H), lambda b, ids: (0, 0)),
                # embedding table: stays in HBM, gathered manually row by row
                pl.BlockSpec(memory_space=pl.ANY),
            ],
            out_specs=pl.BlockSpec((1, S, H), lambda b, ids: (b, 0, 0)),
            scratch_shapes=[
                pltpu.VMEM((S, H), emb_table.dtype),   # gather buffer
                pltpu.SemaphoreType.DMA((nslots,)),    # in-flight copy sems
            ],
        ),
        compiler_params=pltpu.CompilerParams(
            dimension_semantics=("parallel",),         # B rows independent
        ),
    )(ids, pos, emb_table)


def make_position_encodings(max_position_embeddings, hidden_size):
    # Mirrors PositionalEmbedding._generate_position_encodings (in f32).
    i, pos = jnp.meshgrid(
        jnp.arange(hidden_size, dtype=jnp.float32),
        jnp.arange(max_position_embeddings, dtype=jnp.float32),
    )  # both (max_pos, H)
    angle = pos / jnp.power(10000.0, i / hidden_size)
    enc = jnp.sin(angle)
    odd_mask = (jnp.arange(hidden_size) % 2 == 1)[None, :]
    enc = jnp.where(odd_mask, jnp.cos(angle), enc)
    return enc.astype(jnp.float32)


if __name__ == "__main__":
    # Small config consistent with the module's forward.
    vocab_size = 64
    hidden_size = 32
    max_position_embeddings = 8
    pad_token_id = 0
    batch = 2
    seq = max_position_embeddings

    key = jax.random.PRNGKey(0)
    k_emb, k_ids = jax.random.split(key)

    # nn.Embedding weights ~ N(0,1); padding_idx row zeroed.
    emb_table = jax.random.normal(k_emb, (vocab_size, hidden_size), dtype=jnp.float32)
    emb_table = emb_table.at[pad_token_id].set(0.0)

    pos_enc = make_position_encodings(max_position_embeddings, hidden_size)

    # NOTE: like nn.Embedding, token ids must lie in [0, vocab_size);
    # the kernel does not range-check them.
    input_ids = jax.random.randint(k_ids, (batch, seq), 0, vocab_size, dtype=jnp.int32)

    out = positional_embedding(input_ids, emb_table, pos_enc)
    out = jax.block_until_ready(out)

    # Reference check in plain JAX.
    ref = emb_table[input_ids] + pos_enc[None, :seq, :]
    assert out.shape == (batch, seq, hidden_size)
    assert jnp.allclose(out, ref, atol=1e-5, rtol=1e-5)

    print("KERNEL_OK")
</pallas_src>

<mosaic_0001>
module attributes {stable_mosaic.version = 11 : i64} {
  func.func @_pos_embed_kernel(%arg0: i32, %arg1: memref<2x8xi32, #tpu.memory_space<smem>>, %arg2: memref<8x32xf32, #tpu.memory_space<vmem>>, %arg3: memref<64x32xf32, #tpu.memory_space<any>>, %arg4: memref<1x8x32xf32, #tpu.memory_space<vmem>>, %arg5: memref<8x32xf32, #tpu.memory_space<vmem>>, %arg6: memref<8x!tpu.dma_semaphore, #tpu.memory_space<semaphore_mem>>) attributes {dimension_semantics = [#tpu.dimension_semantics<parallel>], iteration_bounds = array<i64: 2>, scalar_prefetch = 1 : i64, scratch_operands = 2 : i64, tpu.core_type = #tpu.core_type<tc>, window_params = [{pipeline_mode = #tpu.pipeline_mode<synchronous>, transform_indices = @transform_0, window_bounds = array<i64: 8, 32>}, {}, {transform_indices = @transform_2, window_bounds = array<i64: 1, 8, 32>}]} {
    %c0_i32 = arith.constant 0 : i32
    %c8_i32 = arith.constant 8 : i32
    %0 = arith.addi %c0_i32, %c8_i32 : i32
    %c1_i32 = arith.constant 1 : i32
    scf.for %arg7 = %c0_i32 to %0 step %c1_i32  : i32 {
      %c1_i32_11 = arith.constant 1 : i32
      %8 = arith.muli %arg7, %c1_i32_11 : i32
      %c0_i32_12 = arith.constant 0 : i32
      %9 = arith.addi %c0_i32_12, %8 : i32
      %10 = arith.index_cast %arg0 : i32 to index
      %11 = arith.index_cast %9 : i32 to index
      %12 = memref.load %arg1[%10, %11] : memref<2x8xi32, #tpu.memory_space<smem>>
      %c8_i32_13 = arith.constant 8 : i32
      %c0_i32_14 = arith.constant 0 : i32
      %13 = arith.cmpi eq, %c8_i32_13, %c0_i32_14 : i32
      %c1_i32_15 = arith.constant 1 : i32
      %14 = arith.select %13, %c1_i32_15, %c8_i32_13 : i32
      %15 = arith.remsi %9, %14 : i32
      %c0_i32_16 = arith.constant 0 : i32
      %16 = arith.cmpi ne, %15, %c0_i32_16 : i32
      %c0_i32_17 = arith.constant 0 : i32
      %17 = arith.cmpi slt, %15, %c0_i32_17 : i32
      %c0_i32_18 = arith.constant 0 : i32
      %18 = arith.cmpi slt, %14, %c0_i32_18 : i32
      %19 = arith.xori %17, %18 : i1
      %20 = arith.andi %19, %16 : i1
      %21 = arith.addi %15, %14 : i32
      %22 = arith.select %20, %21, %15 : i32
      %c0_i32_19 = arith.constant 0 : i32
      %23 = tpu.memref_slice %arg3[%12, %c0_i32_19] : memref<64x32xf32, #tpu.memory_space<any>> -> memref<1x32xf32, #tpu.memory_space<any>>
      %c0_i32_20 = arith.constant 0 : i32
      %24 = tpu.memref_slice %arg5[%9, %c0_i32_20] : memref<8x32xf32, #tpu.memory_space<vmem>> -> memref<1x32xf32, #tpu.memory_space<vmem>>
      %25 = tpu.memref_slice %arg6[%22] : memref<8x!tpu.dma_semaphore, #tpu.memory_space<semaphore_mem>> -> memref<1x!tpu.dma_semaphore, #tpu.memory_space<semaphore_mem>>
      %26 = tpu.memref_squeeze %25 : memref<1x!tpu.dma_semaphore, #tpu.memory_space<semaphore_mem>> -> memref<!tpu.dma_semaphore, #tpu.memory_space<semaphore_mem>>
      tpu.enqueue_dma source(%23 : memref<1x32xf32, #tpu.memory_space<any>>) target(%24 : memref<1x32xf32, #tpu.memory_space<vmem>>) target_semaphore(%26 : memref<!tpu.dma_semaphore, #tpu.memory_space<semaphore_mem>>)
    }
    %c8_i32_0 = arith.constant 8 : i32
    %c0_i32_1 = arith.constant 0 : i32
    %c8_i32_2 = arith.constant 8 : i32
    %1 = arith.addi %c0_i32_1, %c8_i32_2 : i32
    %c1_i32_3 = arith.constant 1 : i32
    scf.for %arg7 = %c0_i32_1 to %1 step %c1_i32_3  : i32 {
      %c1_i32_11 = arith.constant 1 : i32
      %8 = arith.muli %arg7, %c1_i32_11 : i32
      %c0_i32_12 = arith.constant 0 : i32
      %9 = arith.addi %c0_i32_12, %8 : i32
      %c8_i32_13 = arith.constant 8 : i32
      %c0_i32_14 = arith.constant 0 : i32
      %10 = arith.cmpi eq, %c8_i32_13, %c0_i32_14 : i32
      %c1_i32_15 = arith.constant 1 : i32
      %11 = arith.select %10, %c1_i32_15, %c8_i32_13 : i32
      %12 = arith.remsi %9, %11 : i32
      %c0_i32_16 = arith.constant 0 : i32
      %13 = arith.cmpi ne, %12, %c0_i32_16 : i32
      %c0_i32_17 = arith.constant 0 : i32
      %14 = arith.cmpi slt, %12, %c0_i32_17 : i32
      %c0_i32_18 = arith.constant 0 : i32
      %15 = arith.cmpi slt, %11, %c0_i32_18 : i32
      %16 = arith.xori %14, %15 : i1
      %17 = arith.andi %16, %13 : i1
      %18 = arith.addi %12, %11 : i32
      %19 = arith.select %17, %18, %12 : i32
      %c0_i32_19 = arith.constant 0 : i32
      %c0_i32_20 = arith.constant 0 : i32
      %20 = tpu.memref_slice %arg3[%c0_i32_19, %c0_i32_20] : memref<64x32xf32, #tpu.memory_space<any>> -> memref<1x32xf32, #tpu.memory_space<any>>
      %c0_i32_21 = arith.constant 0 : i32
      %21 = tpu.memref_slice %arg5[%9, %c0_i32_21] : memref<8x32xf32, #tpu.memory_space<vmem>> -> memref<1x32xf32, #tpu.memory_space<vmem>>
      %22 = tpu.memref_slice %arg6[%19] : memref<8x!tpu.dma_semaphore, #tpu.memory_space<semaphore_mem>> -> memref<1x!tpu.dma_semaphore, #tpu.memory_space<semaphore_mem>>
      %23 = tpu.memref_squeeze %22 : memref<1x!tpu.dma_semaphore, #tpu.memory_space<semaphore_mem>> -> memref<!tpu.dma_semaphore, #tpu.memory_space<semaphore_mem>>
      tpu.wait_dma2 semaphore(%23 : memref<!tpu.dma_semaphore, #tpu.memory_space<semaphore_mem>>) src(%20 : memref<1x32xf32, #tpu.memory_space<any>>) dst(%21 : memref<1x32xf32, #tpu.memory_space<vmem>>)
      %c8_i32_22 = arith.constant 8 : i32
      %24 = arith.addi %9, %c8_i32_22 : i32
      %c8_i32_23 = arith.constant 8 : i32
      %25 = arith.cmpi slt, %24, %c8_i32_23 : i32
      %26 = arith.extui %25 : i1 to i32
      %c0_i32_24 = arith.constant 0 : i32
      %27 = arith.cmpi ne, %26, %c0_i32_24 : i32
      scf.if %27 {
        %c8_i32_25 = arith.constant 8 : i32
        %28 = arith.addi %9, %c8_i32_25 : i32
        %29 = arith.index_cast %arg0 : i32 to index
        %30 = arith.index_cast %28 : i32 to index
        %31 = memref.load %arg1[%29, %30] : memref<2x8xi32, #tpu.memory_space<smem>>
        %c8_i32_26 = arith.constant 8 : i32
        %c0_i32_27 = arith.constant 0 : i32
        %32 = arith.cmpi eq, %c8_i32_26, %c0_i32_27 : i32
        %c1_i32_28 = arith.constant 1 : i32
        %33 = arith.select %32, %c1_i32_28, %c8_i32_26 : i32
        %34 = arith.remsi %28, %33 : i32
        %c0_i32_29 = arith.constant 0 : i32
        %35 = arith.cmpi ne, %34, %c0_i32_29 : i32
        %c0_i32_30 = arith.constant 0 : i32
        %36 = arith.cmpi slt, %34, %c0_i32_30 : i32
        %c0_i32_31 = arith.constant 0 : i32
        %37 = arith.cmpi slt, %33, %c0_i32_31 : i32
        %38 = arith.xori %36, %37 : i1
        %39 = arith.andi %38, %35 : i1
        %40 = arith.addi %34, %33 : i32
        %41 = arith.select %39, %40, %34 : i32
        %c0_i32_32 = arith.constant 0 : i32
        %42 = tpu.memref_slice %arg3[%31, %c0_i32_32] : memref<64x32xf32, #tpu.memory_space<any>> -> memref<1x32xf32, #tpu.memory_space<any>>
        %c0_i32_33 = arith.constant 0 : i32
        %43 = tpu.memref_slice %arg5[%28, %c0_i32_33] : memref<8x32xf32, #tpu.memory_space<vmem>> -> memref<1x32xf32, #tpu.memory_space<vmem>>
        %44 = tpu.memref_slice %arg6[%41] : memref<8x!tpu.dma_semaphore, #tpu.memory_space<semaphore_mem>> -> memref<1x!tpu.dma_semaphore, #tpu.memory_space<semaphore_mem>>
        %45 = tpu.memref_squeeze %44 : memref<1x!tpu.dma_semaphore, #tpu.memory_space<semaphore_mem>> -> memref<!tpu.dma_semaphore, #tpu.memory_space<semaphore_mem>>
        tpu.enqueue_dma source(%42 : memref<1x32xf32, #tpu.memory_space<any>>) target(%43 : memref<1x32xf32, #tpu.memory_space<vmem>>) target_semaphore(%45 : memref<!tpu.dma_semaphore, #tpu.memory_space<semaphore_mem>>)
      } else {
      }
    }
    %c8_i32_4 = arith.constant 8 : i32
    %c0 = arith.constant 0 : index
    %c0_5 = arith.constant 0 : index
    %2 = vector.load %arg5[%c0, %c0_5] : memref<8x32xf32, #tpu.memory_space<vmem>>, vector<8x32xf32>
    %c0_6 = arith.constant 0 : index
    %c0_7 = arith.constant 0 : index
    %3 = vector.load %arg2[%c0_6, %c0_7] : memref<8x32xf32, #tpu.memory_space<vmem>>, vector<8x32xf32>
    %4 = arith.addf %2, %3 : vector<8x32xf32>
    %c0_8 = arith.constant 0 : index
    %c0_9 = arith.constant 0 : index
    %c0_10 = arith.constant 0 : index
    %5 = vector.load %arg4[%c0_8, %c0_9, %c0_10] : memref<1x8x32xf32, #tpu.memory_space<vmem>>, vector<1x8x32xf32>
    %6 = vector.shape_cast %5 : vector<1x8x32xf32> to vector<8x32xf32>
    %7 = vector.shape_cast %4 : vector<8x32xf32> to vector<1x8x32xf32>
    tpu.vector_store %arg4[%c0_8, %c0_9, %c0_10], %7 {strides = array<i32>} : memref<1x8x32xf32, #tpu.memory_space<vmem>>, vector<1x8x32xf32>,
    return
  }
  func.func @transform_0(%arg0: i32, %arg1: memref<2x8xi32, #tpu.memory_space<smem>>) -> (i32, i32) {
    %c0_i32 = arith.constant 0 : i32
    %c0_i32_0 = arith.constant 0 : i32
    %c0_i32_1 = arith.constant 0 : i32
    return %c0_i32, %c0_i32_0 : i32, i32
  }
  func.func @transform_2(%arg0: i32, %arg1: memref<2x8xi32, #tpu.memory_space<smem>>) -> (i32, i32, i32) {
    %c0_i32 = arith.constant 0 : i32
    %c0_i32_0 = arith.constant 0 : i32
    %c0_i32_1 = arith.constant 0 : i32
    return %arg0, %c0_i32, %c0_i32_0 : i32, i32, i32
  }
}

</mosaic_0001>

<llo_original>
// kernel: tpu_custom_call.1
$region0: #{tpu_custom_call.1}
  #allocation0 [shape = 'u32[]', space=smem, size = 0x4, offset = 0x4, fixed_abs, tag = 'smem constant byte address 0x4 - core index']
  #allocation1 [shape = 'u32[144,128]{1,0:T(1,128)}', space=vmem, size = 0x12000, scoped, tag = 'internal scratch']
  #allocation2 [shape = 'f32[8,32]{1,0:T(8,128)}', space=vmem, size = 0x1000, scoped, tag = 'scratch operand']
  #allocation3 [shape = 's32[8]{0}', space=sflag, size = 0x20, scoped, tag = 'scratch operand']
  #allocation4 [shape = 's32[1]{0}', space=sflag, size = 0x4, scoped, tag = 'scoped memory for tpu_custom_call.1']
  #allocation5 [shape = 'u8[1024]{0}', space=smem, size = 0x400, scoped, tag = 'prefetched SMEM operand 0']
  #allocation8 [shape = 's32[]', space=sflag, size = 0x4, offset = 0, fixed_abs, tag = 'sflag constant byte address 0x0 - dummy sync flag']
  #allocation9 [shape = 's32[]', space=sflag, size = 0x4, offset = 0, fixed_abs, tag = 'sflag constant byte address 0x0 - dummy sync flag']
  %s0 = inlined_call_operand.vmem [shape: s32[2,8], index: 0, kind: input, shape index: {}]
  %s1 = inlined_call_operand.vmem [shape: f32[8,32], index: 1, kind: input, shape index: {}]
  %s2 = inlined_call_operand.vmem [shape: f32[64,32], index: 2, kind: input, shape index: {}]
  %s3 = inlined_call_operand.hbm [shape: f32[2,8,32], index: 3, kind: output, shape index: {}]
  %s4 = sld [smem:[#allocation0]]
  $region115: #{tpu_custom_call.1} parent=0
    _
  %s6 = ssub.s32 1, %s4
  %s7 = scalar_select 0, %s6, %s4
  %s8 = sshll.u32 %s0, 4
  %s9 = int_to_ptr.vmem [resolvable:$true] %s8
  %11 = dma.vmem_to_smem %s9, 32, [#allocation5], [#allocation4]
  %12 = dma.done [#allocation4], 32
  %13 = sfence
  $region1: #{tpu_custom_call.1} parent=0
    #allocation6 [shape = 'u8[8192]{0}', space=vmem, size = 0x2000, scoped, tag = 'output window, operand 0']
    #allocation7 [shape = 's32[2]{0}', space=sflag, size = 0x8, scoped, tag = 'scoped memory for tpu_custom_call.1']
    %14 = vsyncpa [#allocation7], 0
    %s15 = scalar_lea.sflag [#allocation7], 1
    %16 = vsyncpa %s15, 0
    loop: start=0, step=1, limit=4
    $region2: #{tpu_custom_call.1} parent=1 // loop_pre_header
      _
    $region3: #{tpu_custom_call.1} parent=1 // loop_header
      %s18 = sphi 0, %s22
      %p19 = scmp.ge.s32.totalorder %s18, 4
      %s26 = sphi 0, %s26
      %s28 = sphi 0, %s26
      %s29 = sphi 0, %s28
      %s43 = sphi 0, %s29
      %s49 = sphi 0, %s51
      %s52 = sphi 0, %s49
      %s53 = sphi 0, %s52
      %s69 = sphi 0, %s53
    $region4: #{tpu_custom_call.1} parent=1 // loop_header_branch
      %21 = sbr.rel (%p19) target = $region8
    $region5: #{tpu_custom_call.1} parent=1 // loop_body
      %s23 = ssub.s32 %s18, 1
      %s24 = ssub.s32 %s18, 2
      %s25 = sadd.s32 %s18, 1
      %s27 = sadd.s32 %s26, 1
      %p30 = scmp.eq.s32.totalorder %s18, 1
      %p31 = scmp.ne.s32.totalorder %s26, %s28
      %p32 = scmp.eq.s32.totalorder %s18, 0
      %p33 = por %p31, %p32
      %p34 = scmp.ne.s32.totalorder %s26, %s28
      %p35 = scmp.eq.s32.totalorder %s23, 1
      %p36 = por %p34, %p35
      %p37 = scmp.ne.s32.totalorder %s28, %s29
      %p38 = scmp.eq.s32.totalorder %s23, 0
      %p39 = por %p37, %p38
      %p40 = scmp.ne.s32.totalorder %s28, %s29
      %p41 = scmp.eq.s32.totalorder %s24, 1
      %p42 = por %p40, %p41
      %p44 = scmp.ne.s32.totalorder %s29, %s43
      %p45 = scmp.eq.s32.totalorder %s24, 0
      %p46 = por %p44, %p45
      %s47 = ssub.s32 %s18, %s25
      %p48 = scmp.eq.s32.totalorder %s47, 0
      %s50 = sadd.s32 %s49, 1
      %s51 = scalar_select %p48, %s49, %s50
      %p54 = pneg %p48
      %p55 = scmp.eq.s32.totalorder %s18, 1
      %p56 = por %p54, %p55
      %p57 = scmp.ne.s32.totalorder %s49, %s52
      %p58 = scmp.eq.s32.totalorder %s18, 0
      %p59 = por %p57, %p58
      %p60 = scmp.ne.s32.totalorder %s49, %s52
      %p61 = scmp.eq.s32.totalorder %s23, 1
      %p62 = por %p60, %p61
      %p63 = scmp.ne.s32.totalorder %s52, %s53
      %p64 = scmp.eq.s32.totalorder %s23, 0
      %p65 = por %p63, %p64
      %p66 = scmp.ne.s32.totalorder %s52, %s53
      %p67 = scmp.eq.s32.totalorder %s24, 1
      %p68 = por %p66, %p67
      %p70 = scmp.ne.s32.totalorder %s53, %s69
      %p71 = scmp.eq.s32.totalorder %s24, 0
      %p72 = por %p70, %p71
      %p73 = scmp.le.s32.totalorder 1, %s18
      %p74 = scmp.lt.s32.totalorder %s18, 3
      %p75 = pnand %p73, %p74
      %p76 = pneg %p75
      // Predicated region
      $region9: #{tpu_custom_call.1} parent=5 // pred_check
        _
      $region10: #{tpu_custom_call.1} parent=5 // pred_check_branch
        %78 = sbr.rel (%p75) target = $region12
      $region11: #{tpu_custom_call.1} parent=5 // pred_region
        %s79 = ssub.s32 %s18, 1
        // Predicated region
        $region13: #{tpu_custom_call.1} parent=11 // pred_check
          %p80 = pneg %p39
        $region14: #{tpu_custom_call.1} parent=11 // pred_check_branch
          %82 = sbr.rel (%p80) target = $region16
        $region15: #{tpu_custom_call.1} parent=11 // pred_region
          _
        $region16: #{tpu_custom_call.1} parent=11 // pred_fallthru
          _
      $region12: #{tpu_custom_call.1} parent=5 // pred_fallthru
        _
      %p83 = scmp.lt.s32.totalorder %s18, 2
      // Predicated region
      $region17: #{tpu_custom_call.1} parent=5 // pred_check
        %p84 = pneg %p83
      $region18: #{tpu_custom_call.1} parent=5 // pred_check_branch
        %86 = sbr.rel (%p84) target = $region20
      $region19: #{tpu_custom_call.1} parent=5 // pred_region
        _
      $region20: #{tpu_custom_call.1} parent=5 // pred_fallthru
        _
      %p87 = scmp.le.s32.totalorder 1, %s18
      %p88 = scmp.lt.s32.totalorder %s18, 3
      %p89 = pnand %p87, %p88
      %p90 = pneg %p89
      // Predicated region
      $region21: #{tpu_custom_call.1} parent=5 // pred_check
        _
      $region22: #{tpu_custom_call.1} parent=5 // pred_check_branch
        %92 = sbr.rel (%p89) target = $region24
      $region23: #{tpu_custom_call.1} parent=5 // pred_region
        %s93 = ssub.s32 %s18, 1
        %p94 = pneg %p39
        %p95 = pneg %p36
        %p96 = pneg %p65
        %p97 = pneg %p62
        %s98 = sand.u32 %s52, 1
        %s99 = scalar_lea.sflag [#allocation7], %s98
        %s100 = sand.u32 %s52, 1
        %s101 = smul.addr %s100, 8
        %s102 = scalar_lea.vmem [#allocation6], %s101
        loop: start=0, step=1, limit=8
        $region25: #{tpu_custom_call.1} parent=23 // loop_pre_header
          _
        $region26: #{tpu_custom_call.1} parent=23 // loop_header
          %s104 = sphi 0, %s108
          %p105 = scmp.ge.s32.totalorder %s104, 8
        $region27: #{tpu_custom_call.1} parent=23 // loop_header_branch
          %107 = sbr.rel (%p105) target = $region31
        $region28: #{tpu_custom_call.1} parent=23 // loop_body
          %s109 = sshra.s32 %s104, 7
          %s110 = sand.u32 %s104, 127
          %s111 = sadd.s32 %s109, %s23
          %s112 = smul.u32 %s111, 128
          %s113 = sshra.s32 %s104, 7
          %s114 = sand.u32 %s104, 127
          %s115 = sadd.s32 %s112, %s114
          %s116 = sld [smem:[#allocation5 + %s115]]
          %p117 = scmp.lt.s32.totalorder %s104, 0
          %s118 = ssub.s32 0, %s104
          %s119 = scalar_select %p117, %s118, %s104
          %s120 = sand.u32 %s119, 7
          %s121 = ssub.s32 0, %s120
          %s122 = scalar_select %p117, %s121, %s120
          %p123 = scmp.ne.s32.totalorder %s122, 0
          %p124 = scmp.lt.s32.totalorder %s122, 0
          %p125 = pnand %p124, %p123
          %p126 = pneg %p125
          %s127 = sadd.s32 %s122, 8
          %s128 = scalar_select %p126, %s127, %s122
          %s129 = scalar_lea.vmem %s2, %s116
          %s130 = scalar_lea.vmem [#allocation2], %s104
          %s131 = scalar_lea.sflag [#allocation3], %s128
          %p133 = scmp.lt.u32.totalorder 1, 8
          %p134 = pneg %p133
          // Predicated region
          $region32: #{tpu_custom_call.1} parent=28 // pred_check
            _
          $region33: #{tpu_custom_call.1} parent=28 // pred_check_branch
            %136 = sbr.rel (%p133) target = $region35
          $region34: #{tpu_custom_call.1} parent=28 // pred_region
            %s152 = sand.u32 1, 7
            %p153 = scmp.eq.s32.totalorder %s152, 0
            %p154 = pneg %p153
            // Predicated region
            $region47: #{tpu_custom_call.1} parent=34 // pred_check
              _
            $region48: #{tpu_custom_call.1} parent=34 // pred_check_branch
              %156 = sbr.rel (%p153) target = $region50
            $region49: #{tpu_custom_call.1} parent=34 // pred_region
              %s157 = sand.u32 1, 7
              %s158 = ssub.s32 1, %s157
              %s159 = scalar_lea.vmem %s129, %s158
              %s160 = ssub.s32 1, %s157
              %s161 = scalar_lea.vmem %s130, %s160 [#allocation2]
              %s162 = sshll.u32 1, %s157
              %s163 = ssub.s32 %s162, 1
              loop: start=0, step=1, limit=1
              $region51: #{tpu_custom_call.1} parent=49 // loop_pre_header
                _
              $region52: #{tpu_custom_call.1} parent=49 // loop_header
                %s165 = sphi 0, %s169
                %p166 = scmp.ge.s32.totalorder %s165, 1
                %s170 = sphi %s159, %s159
                %s171 = sphi %s161, %s161
              $region53: #{tpu_custom_call.1} parent=49 // loop_header_branch
                %168 = sbr.rel (%p166) target = $region57
              $region54: #{tpu_custom_call.1} parent=49 // loop_body
                %v172 = vld [vmem:[%s170] sm:%s163]
                %173 = vst [vmem:[%s171] sm:%s163] %v172
              $region55: #{tpu_custom_call.1} parent=49 // loop_footer
                %s169 = sadd.s32 1, %s165
              $region56: #{tpu_custom_call.1} parent=49 // loop_footer_branch
                %164 = sbr.rel target = $region52
              $region57: #{tpu_custom_call.1} parent=49 // loop_exit
                _
            $region50: #{tpu_custom_call.1} parent=34 // pred_fallthru
              _
          $region35: #{tpu_custom_call.1} parent=28 // pred_fallthru
            _
          // Predicated region
          $region36: #{tpu_custom_call.1} parent=28 // pred_check
            %p137 = pneg %p133
          $region37: #{tpu_custom_call.1} parent=28 // pred_check_branch
            %139 = sbr.rel (%p137) target = $region39
          $region38: #{tpu_custom_call.1} parent=28 // pred_region
            %s140 = sshll.u32 1, 1
            %s141 = ssub.s32 %s140, 1
            loop: start=0, step=1, limit=1
            $region40: #{tpu_custom_call.1} parent=38 // loop_pre_header
              _
            $region41: #{tpu_custom_call.1} parent=38 // loop_header
              %s143 = sphi 0, %s147
              %p144 = scmp.ge.s32.totalorder %s143, 1
              %s148 = sphi %s129, %s129
              %s149 = sphi %s130, %s130
            $region42: #{tpu_custom_call.1} parent=38 // loop_header_branch
              %146 = sbr.rel (%p144) target = $region46
            $region43: #{tpu_custom_call.1} parent=38 // loop_body
              %v150 = vld [vmem:[%s148] sm:%s141]
              %151 = vst [vmem:[%s149] sm:%s141] %v150
            $region44: #{tpu_custom_call.1} parent=38 // loop_footer
              %s147 = sadd.s32 1, %s143
            $region45: #{tpu_custom_call.1} parent=38 // loop_footer_branch
              %142 = sbr.rel target = $region41
            $region46: #{tpu_custom_call.1} parent=38 // loop_exit
              _
          $region39: #{tpu_custom_call.1} parent=28 // pred_fallthru
            _
          // Predicated region
          $region58: #{tpu_custom_call.1} parent=28 // pred_check
            _
          $region59: #{tpu_custom_call.1} parent=28 // pred_check_branch
            %176 = sbr.rel (0) target = $region61
          $region60: #{tpu_custom_call.1} parent=28 // pred_region
            %177 = vsyncadd %s131, 16
          $region61: #{tpu_custom_call.1} parent=28 // pred_fallthru
            _
        $region29: #{tpu_custom_call.1} parent=23 // loop_footer
          %s108 = sadd.s32 1, %s104
        $region30: #{tpu_custom_call.1} parent=23 // loop_footer_branch
          %103 = sbr.rel target = $region26
        $region31: #{tpu_custom_call.1} parent=23 // loop_exit
          _
        loop: start=0, step=1, limit=8
        $region62: #{tpu_custom_call.1} parent=23 // loop_pre_header
          _
        $region63: #{tpu_custom_call.1} parent=23 // loop_header
          %s179 = sphi 0, %s183
          %p180 = scmp.ge.s32.totalorder %s179, 8
        $region64: #{tpu_custom_call.1} parent=23 // loop_header_branch
          %182 = sbr.rel (%p180) target = $region68
        $region65: #{tpu_custom_call.1} parent=23 // loop_body
          %p184 = scmp.lt.s32.totalorder %s179, 0
          %s185 = ssub.s32 0, %s179
          %s186 = scalar_select %p184, %s185, %s179
          %s187 = sand.u32 %s186, 7
          %s188 = ssub.s32 0, %s187
          %s189 = scalar_select %p184, %s188, %s187
          %p190 = scmp.ne.s32.totalorder %s189, 0
          %p191 = scmp.lt.s32.totalorder %s189, 0
          %p192 = pnand %p191, %p190
          %p193 = pneg %p192
          %s194 = sadd.s32 %s189, 8
          %s195 = scalar_select %p193, %s194, %s189
          %s196 = scalar_lea.sflag [#allocation3], %s195
          %s197 = smul.u32 1, 1
          %s198 = sshll.u32 %s197, 4
          %199 = dma.done %s196, %s198
          %s200 = sadd.s32 %s179, 8
          %p201 = scmp.lt.s32.totalorder %s200, 8
          // Predicated region
          $region69: #{tpu_custom_call.1} parent=65 // pred_check
            %p202 = pneg %p201
          $region70: #{tpu_custom_call.1} parent=65 // pred_check_branch
            %204 = sbr.rel (%p202) target = $region72
          $region71: #{tpu_custom_call.1} parent=65 // pred_region
            %s205 = sshra.s32 %s200, 7
            %s206 = sand.u32 %s200, 127
            %s207 = sadd.s32 %s205, %s23
            %s208 = smul.u32 %s207, 128
            %s209 = sshra.s32 %s200, 7
            %s210 = sand.u32 %s200, 127
            %s211 = sadd.s32 %s208, %s210
            %s212 = sld [smem:[#allocation5 + %s211]]
            %p213 = scmp.lt.s32.totalorder %s200, 0
            %s214 = ssub.s32 0, %s200
            %s215 = scalar_select %p213, %s214, %s200
            %s216 = sand.u32 %s215, 7
            %s217 = ssub.s32 0, %s216
            %s218 = scalar_select %p213, %s217, %s216
            %p219 = scmp.ne.s32.totalorder %s218, 0
            %p220 = scmp.lt.s32.totalorder %s218, 0
            %p221 = pnand %p220, %p219
            %p222 = pneg %p221
            %s223 = sadd.s32 %s218, 8
            %s224 = scalar_select %p222, %s223, %s218
            %s225 = scalar_lea.vmem %s2, %s212
            %s226 = scalar_lea.vmem [#allocation2], %s200
            %s227 = scalar_lea.sflag [#allocation3], %s224
            %p229 = scmp.lt.u32.totalorder 1, 8
            %p230 = pneg %p229
            // Predicated region
            $region73: #{tpu_custom_call.1} parent=71 // pred_check
              _
            $region74: #{tpu_custom_call.1} parent=71 // pred_check_branch
              %232 = sbr.rel (%p229) target = $region76
            $region75: #{tpu_custom_call.1} parent=71 // pred_region
              %s248 = sand.u32 1, 7
              %p249 = scmp.eq.s32.totalorder %s248, 0
              %p250 = pneg %p249
              // Predicated region
              $region88: #{tpu_custom_call.1} parent=75 // pred_check
                _
              $region89: #{tpu_custom_call.1} parent=75 // pred_check_branch
                %252 = sbr.rel (%p249) target = $region91
              $region90: #{tpu_custom_call.1} parent=75 // pred_region
                %s253 = sand.u32 1, 7
                %s254 = ssub.s32 1, %s253
                %s255 = scalar_lea.vmem %s225, %s254
                %s256 = ssub.s32 1, %s253
                %s257 = scalar_lea.vmem %s226, %s256 [#allocation2]
                %s258 = sshll.u32 1, %s253
                %s259 = ssub.s32 %s258, 1
                loop: start=0, step=1, limit=1
                $region92: #{tpu_custom_call.1} parent=90 // loop_pre_header
                  _
                $region93: #{tpu_custom_call.1} parent=90 // loop_header
                  %s261 = sphi 0, %s265
                  %p262 = scmp.ge.s32.totalorder %s261, 1
                  %s266 = sphi %s255, %s255
                  %s267 = sphi %s257, %s257
                $region94: #{tpu_custom_call.1} parent=90 // loop_header_branch
                  %264 = sbr.rel (%p262) target = $region98
                $region95: #{tpu_custom_call.1} parent=90 // loop_body
                  %v268 = vld [vmem:[%s266] sm:%s259]
                  %269 = vst [vmem:[%s267] sm:%s259] %v268
                $region96: #{tpu_custom_call.1} parent=90 // loop_footer
                  %s265 = sadd.s32 1, %s261
                $region97: #{tpu_custom_call.1} parent=90 // loop_footer_branch
                  %260 = sbr.rel target = $region93
                $region98: #{tpu_custom_call.1} parent=90 // loop_exit
                  _
              $region91: #{tpu_custom_call.1} parent=75 // pred_fallthru
                _
            $region76: #{tpu_custom_call.1} parent=71 // pred_fallthru
              _
            // Predicated region
            $region77: #{tpu_custom_call.1} parent=71 // pred_check
              %p233 = pneg %p229
            $region78: #{tpu_custom_call.1} parent=71 // pred_check_branch
              %235 = sbr.rel (%p233) target = $region80
            $region79: #{tpu_custom_call.1} parent=71 // pred_region
              %s236 = sshll.u32 1, 1
              %s237 = ssub.s32 %s236, 1
              loop: start=0, step=1, limit=1
              $region81: #{tpu_custom_call.1} parent=79 // loop_pre_header
                _
              $region82: #{tpu_custom_call.1} parent=79 // loop_header
                %s239 = sphi 0, %s243
                %p240 = scmp.ge.s32.totalorder %s239, 1
                %s244 = sphi %s225, %s225
                %s245 = sphi %s226, %s226
              $region83: #{tpu_custom_call.1} parent=79 // loop_header_branch
                %242 = sbr.rel (%p240) target = $region87
              $region84: #{tpu_custom_call.1} parent=79 // loop_body
                %v246 = vld [vmem:[%s244] sm:%s237]
                %247 = vst [vmem:[%s245] sm:%s237] %v246
              $region85: #{tpu_custom_call.1} parent=79 // loop_footer
                %s243 = sadd.s32 1, %s239
              $region86: #{tpu_custom_call.1} parent=79 // loop_footer_branch
                %238 = sbr.rel target = $region82
              $region87: #{tpu_custom_call.1} parent=79 // loop_exit
                _
            $region80: #{tpu_custom_call.1} parent=71 // pred_fallthru
              _
            // Predicated region
            $region99: #{tpu_custom_call.1} parent=71 // pred_check
              _
            $region100: #{tpu_custom_call.1} parent=71 // pred_check_branch
              %272 = sbr.rel (0) target = $region102
            $region101: #{tpu_custom_call.1} parent=71 // pred_region
              %273 = vsyncadd %s227, 16
            $region102: #{tpu_custom_call.1} parent=71 // pred_fallthru
              _
          $region72: #{tpu_custom_call.1} parent=65 // pred_fallthru
            _
        $region66: #{tpu_custom_call.1} parent=23 // loop_footer
          %s183 = sadd.s32 1, %s179
        $region67: #{tpu_custom_call.1} parent=23 // loop_footer_branch
          %178 = sbr.rel target = $region63
        $region68: #{tpu_custom_call.1} parent=23 // loop_exit
          _
        %v274 = vld [vmem:[#allocation2] sm:$0xff]
        %v275 = vld [vmem:[%s1] sm:$0xff]
        %v276 = vadd.f32 %v274, %v275
        %vm277 = vcmask 261120
        %278 = vst.msk [vmem:[%s102] sm:$0xff] %vm277, %v276
        %s279 = sand.u32 %s52, 1
        %s280 = scalar_lea.sflag [#allocation7], %s279
        %s281 = sand.u32 %s52, 1
        %s282 = smul.addr %s281, 8
        %s283 = scalar_lea.vmem [#allocation6], %s282
        // Predicated region
        $region103: #{tpu_custom_call.1} parent=23 // pred_check
          %p284 = pneg %p62
        $region104: #{tpu_custom_call.1} parent=23 // pred_check_branch
          %286 = sbr.rel (%p284) target = $region106
        $region105: #{tpu_custom_call.1} parent=23 // pred_region
          %s288 = ssub.s32 128, 128
          %289 = vsyncadd %s280, %s288
          %s290 = smul.addr %s23, 128
          %s291 = scalar_lea.hbm %s3, %s290
          %s293 = sshll.u32 %s283, 4
          %s294 = int_to_ptr.vmem [resolvable:$true] %s293
          %296 = dma.vmem_to_hbm [thread:$0]  %s294, 128, %s291, %s280
        $region106: #{tpu_custom_call.1} parent=23 // pred_fallthru
          _
      $region24: #{tpu_custom_call.1} parent=5 // pred_fallthru
        _
      %p297 = scmp.le.s32.totalorder 2, %s18
      // Predicated region
      $region107: #{tpu_custom_call.1} parent=5 // pred_check
        %p298 = pneg %p297
      $region108: #{tpu_custom_call.1} parent=5 // pred_check_branch
        %300 = sbr.rel (%p298) target = $region110
      $region109: #{tpu_custom_call.1} parent=5 // pred_region
        %s301 = ssub.s32 %s18, 2
        // Predicated region
        $region111: #{tpu_custom_call.1} parent=109 // pred_check
          %p302 = pneg %p68
        $region112: #{tpu_custom_call.1} parent=109 // pred_check_branch
          %304 = sbr.rel (%p302) target = $region114
        $region113: #{tpu_custom_call.1} parent=109 // pred_region
          %s305 = sand.u32 %s53, 1
          %s306 = scalar_lea.sflag [#allocation7], %s305
          %s307 = sand.u32 %s53, 1
          %s308 = smul.addr %s307, 8
          %s309 = scalar_lea.vmem [#allocation6], %s308
          %310 = dma.done %s306, 128
        $region114: #{tpu_custom_call.1} parent=109 // pred_fallthru
          _
      $region110: #{tpu_custom_call.1} parent=5 // pred_fallthru
        _
    $region6: #{tpu_custom_call.1} parent=1 // loop_footer
      %s22 = sadd.s32 1, %s18
    $region7: #{tpu_custom_call.1} parent=1 // loop_footer_branch
      %17 = sbr.rel target = $region3
    $region8: #{tpu_custom_call.1} parent=1 // loop_exit
      _
    %311 = vsyncpa [#allocation7], 1
    %s312 = scalar_lea.sflag [#allocation7], 1
    %313 = vsyncpa %s312, 1
  %314 = vsyncmov [#allocation3]
  %s315 = vpop.sfrf %314
  %p316 = scmp.eq.s32.totalorder %s315, 0
  %p317 = pneg %p316
  %319 = shalt.err (%p317)
  %s320 = scalar_lea.sflag [#allocation3], 1
  %321 = vsyncmov %s320
  %s322 = vpop.sfrf %321
  %p323 = scmp.eq.s32.totalorder %s322, 0
  %p324 = pneg %p323
  %326 = shalt.err (%p324)
  %s327 = scalar_lea.sflag [#allocation3], 2
  %328 = vsyncmov %s327
  %s329 = vpop.sfrf %328
  %p330 = scmp.eq.s32.totalorder %s329, 0
  %p331 = pneg %p330
  %333 = shalt.err (%p331)
  %s334 = scalar_lea.sflag [#allocation3], 3
  %335 = vsyncmov %s334
  %s336 = vpop.sfrf %335
  %p337 = scmp.eq.s32.totalorder %s336, 0
  %p338 = pneg %p337
  %340 = shalt.err (%p338)
  %s341 = scalar_lea.sflag [#allocation3], 4
  %342 = vsyncmov %s341
  %s343 = vpop.sfrf %342
  %p344 = scmp.eq.s32.totalorder %s343, 0
  %p345 = pneg %p344
  %347 = shalt.err (%p345)
  %s348 = scalar_lea.sflag [#allocation3], 5
  %349 = vsyncmov %s348
  %s350 = vpop.sfrf %349
  %p351 = scmp.eq.s32.totalorder %s350, 0
  %p352 = pneg %p351
  %354 = shalt.err (%p352)
  %s355 = scalar_lea.sflag [#allocation3], 6
  %356 = vsyncmov %s355
  %s357 = vpop.sfrf %356
  %p358 = scmp.eq.s32.totalorder %s357, 0
  %p359 = pneg %p358
  %361 = shalt.err (%p359)
  %s362 = scalar_lea.sflag [#allocation3], 7
  %363 = vsyncmov %s362
  %s364 = vpop.sfrf %363
  %p365 = scmp.eq.s32.totalorder %s364, 0
  %p366 = pneg %p365
  %368 = shalt.err (%p366)

</llo_original>
